<compile_context>
chip_gen: v7x
topology: tpu7x:2x2x1
jax: 0.10.0
libtpu: 0.0.40
codegen_flags: <defaults>
</compile_context>

<pallas_src>
import jax
import jax.numpy as jnp
from jax.experimental import pallas as pl
from jax.experimental.pallas import tpu as pltpu


def _conv1x1_kernel(w_ref, x_ref, o_ref):
    # w_ref: SMEM (Cout, Cin) f32 scalars
    # x_ref: VMEM (NB, Cin, TS, 128)   -- dense sublane x lane tiles per channel
    # o_ref: VMEM (NB, Cout, TS, 128)
    nb = x_ref.shape[0]
    cin = x_ref.shape[1]
    cout = o_ref.shape[1]
    for b in range(nb):                  # NB is 1 except on the tiny single-step path
        for co in range(cout):           # unrolled: Cout is tiny and static
            acc = w_ref[co, 0] * x_ref[b, 0]
            for ci in range(1, cin):     # Cin == 1 for this module; kept for generality
                acc = acc + w_ref[co, ci] * x_ref[b, ci]
            o_ref[b, co] = acc.astype(o_ref.dtype)


def conv1x1_forward(x_nchw, weight):
    """x_nchw: (N, Cin, H, W); weight: (Cout, Cin, 1, 1) -> (N, Cout, H, W)."""
    n, cin, h, w = x_nchw.shape
    cout = weight.shape[0]
    hw = h * w
    itemsize = jnp.dtype(x_nchw.dtype).itemsize

    # --- Sublane-dense view: spatial axis -> (rows, 128), padded once if needed. ---
    rows = pl.cdiv(hw, 128)
    hw_pad = rows * 128
    x3 = x_nchw.reshape(n, cin, hw)                      # free contiguous reshape
    if hw_pad != hw:
        x3 = jnp.pad(x3, ((0, 0), (0, 0), (0, hw_pad - hw)))
    x4 = x3.reshape(n, cin, rows, 128)

    w2d = weight.reshape(cout, cin).astype(jnp.float32)

    # --- Tile selection: cap at 512 rows (64K lanes). Multiple of 8 -> legal block. ---
    MAX_TILE_ROWS = 512
    tile_rows = rows if rows <= MAX_TILE_ROWS else MAX_TILE_ROWS
    num_m = pl.cdiv(rows, tile_rows)

    # Tiny problems: one grid step, full-extent blocks (per-step overhead would dominate).
    total_bytes = n * rows * 128 * (cin + cout) * itemsize
    if num_m == 1 and total_bytes <= (2 << 20):
        batch_block = n
        grid = (1, 1)
    else:
        batch_block = 1
        grid = (n, num_m)

    in_tile_bytes = batch_block * cin * tile_rows * 128 * itemsize
    out_tile_bytes = batch_block * cout * tile_rows * 128 * itemsize
    vmem_limit = 2 * (in_tile_bytes + out_tile_bytes) + (4 << 20)   # double-buffer + slack
    vmem_limit = int(min(max(vmem_limit, 8 << 20), 64 << 20))

    out4 = pl.pallas_call(
        _conv1x1_kernel,
        out_shape=jax.ShapeDtypeStruct((n, cout, rows, 128), x_nchw.dtype),
        grid=grid,
        in_specs=[
            # Weights: a few scalars — SMEM, read on the scalar path.
            pl.BlockSpec(memory_space=pltpu.MemorySpace.SMEM),
            # Input: one batch block, all channels, one dense (TS, 128) spatial tile.
            pl.BlockSpec((batch_block, cin, tile_rows, 128),
                         lambda b, m: (b, 0, m, 0)),
        ],
        out_specs=pl.BlockSpec((batch_block, cout, tile_rows, 128),
                               lambda b, m: (b, 0, m, 0)),
        compiler_params=pltpu.CompilerParams(
            dimension_semantics=("parallel", "parallel"),
            vmem_limit_bytes=vmem_limit),
        cost_estimate=pl.CostEstimate(
            flops=2 * cout * cin * n * hw_pad,
            transcendentals=0,
            bytes_accessed=itemsize * n * hw_pad * (cin + cout) + 4 * cout * cin),
    )(w2d, x4)

    out3 = out4.reshape(n, cout, hw_pad)
    if hw_pad != hw:
        out3 = out3[:, :, :hw]
    return out3.reshape(n, cout, h, w)                   # free contiguous reshape


if __name__ == "__main__":
    key = jax.random.PRNGKey(0)
    k_x, k_w = jax.random.split(key)

    N, CIN, H, W = 2, 1, 16, 16
    COUT = 3  # num_channels

    x = jax.random.normal(k_x, (N, CIN, H, W), dtype=jnp.float32)
    # Conv2d weight shape: (Cout, Cin, kH, kW) = (3, 1, 1, 1).
    weight = jax.random.normal(k_w, (COUT, CIN, 1, 1), dtype=jnp.float32) * 0.1

    out = conv1x1_forward(x, weight)
    jax.block_until_ready(out)

    # Reference check (pure JAX): 1x1 conv, no bias == channel mixing.
    ref = jnp.einsum("nihw,oi->nohw", x, weight.reshape(COUT, CIN))
    assert out.shape == (N, COUT, H, W)
    assert jnp.allclose(out, ref, atol=1e-5, rtol=1e-5)

    print("KERNEL_OK")
</pallas_src>

<mosaic_0001>
module attributes {stable_mosaic.version = 11 : i64} {
  func.func @_conv1x1_kernel(%arg0: i32, %arg1: i32, %arg2: memref<3x1xf32, #tpu.memory_space<smem>>, %arg3: memref<2x1x2x128xf32, #tpu.memory_space<vmem>>, %arg4: memref<2x3x2x128xf32, #tpu.memory_space<vmem>>) attributes {dimension_semantics = [#tpu.dimension_semantics<parallel>, #tpu.dimension_semantics<parallel>], iteration_bounds = array<i64: 1, 1>, scalar_prefetch = 0 : i64, scratch_operands = 0 : i64, tpu.core_type = #tpu.core_type<tc>, window_params = [{transform_indices = @transform_0, window_bounds = array<i64: 3, 1>}, {transform_indices = @transform_1, window_bounds = array<i64: 2, 1, 2, 128>}, {transform_indices = @transform_2, window_bounds = array<i64: 2, 3, 2, 128>}]} {
    %c0 = arith.constant 0 : index
    %c0_0 = arith.constant 0 : index
    %0 = memref.load %arg2[%c0, %c0_0] : memref<3x1xf32, #tpu.memory_space<smem>>
    %c0_1 = arith.constant 0 : index
    %c0_2 = arith.constant 0 : index
    %c0_3 = arith.constant 0 : index
    %c0_4 = arith.constant 0 : index
    %1 = vector.load %arg3[%c0_1, %c0_2, %c0_3, %c0_4] : memref<2x1x2x128xf32, #tpu.memory_space<vmem>>, vector<1x1x2x128xf32>
    %2 = vector.shape_cast %1 : vector<1x1x2x128xf32> to vector<2x128xf32>
    %3 = vector.broadcast %0 : f32 to vector<2x128xf32>
    %4 = arith.mulf %3, %2 : vector<2x128xf32>
    %c0_5 = arith.constant 0 : index
    %c0_6 = arith.constant 0 : index
    %c0_7 = arith.constant 0 : index
    %c0_8 = arith.constant 0 : index
    %5 = vector.load %arg4[%c0_5, %c0_6, %c0_7, %c0_8] : memref<2x3x2x128xf32, #tpu.memory_space<vmem>>, vector<1x1x2x128xf32>
    %6 = vector.shape_cast %5 : vector<1x1x2x128xf32> to vector<2x128xf32>
    %7 = vector.shape_cast %4 : vector<2x128xf32> to vector<1x1x2x128xf32>
    tpu.vector_store %arg4[%c0_5, %c0_6, %c0_7, %c0_8], %7 {strides = array<i32>} : memref<2x3x2x128xf32, #tpu.memory_space<vmem>>, vector<1x1x2x128xf32>,
    %c1 = arith.constant 1 : index
    %c0_9 = arith.constant 0 : index
    %8 = memref.load %arg2[%c1, %c0_9] : memref<3x1xf32, #tpu.memory_space<smem>>
    %c0_10 = arith.constant 0 : index
    %c0_11 = arith.constant 0 : index
    %c0_12 = arith.constant 0 : index
    %c0_13 = arith.constant 0 : index
    %9 = vector.load %arg3[%c0_10, %c0_11, %c0_12, %c0_13] : memref<2x1x2x128xf32, #tpu.memory_space<vmem>>, vector<1x1x2x128xf32>
    %10 = vector.shape_cast %9 : vector<1x1x2x128xf32> to vector<2x128xf32>
    %11 = vector.broadcast %8 : f32 to vector<2x128xf32>
    %12 = arith.mulf %11, %10 : vector<2x128xf32>
    %c0_14 = arith.constant 0 : index
    %c1_15 = arith.constant 1 : index
    %c0_16 = arith.constant 0 : index
    %c0_17 = arith.constant 0 : index
    %13 = vector.load %arg4[%c0_14, %c1_15, %c0_16, %c0_17] : memref<2x3x2x128xf32, #tpu.memory_space<vmem>>, vector<1x1x2x128xf32>
    %14 = vector.shape_cast %13 : vector<1x1x2x128xf32> to vector<2x128xf32>
    %15 = vector.shape_cast %12 : vector<2x128xf32> to vector<1x1x2x128xf32>
    tpu.vector_store %arg4[%c0_14, %c1_15, %c0_16, %c0_17], %15 {strides = array<i32>} : memref<2x3x2x128xf32, #tpu.memory_space<vmem>>, vector<1x1x2x128xf32>,
    %c2 = arith.constant 2 : index
    %c0_18 = arith.constant 0 : index
    %16 = memref.load %arg2[%c2, %c0_18] : memref<3x1xf32, #tpu.memory_space<smem>>
    %c0_19 = arith.constant 0 : index
    %c0_20 = arith.constant 0 : index
    %c0_21 = arith.constant 0 : index
    %c0_22 = arith.constant 0 : index
    %17 = vector.load %arg3[%c0_19, %c0_20, %c0_21, %c0_22] : memref<2x1x2x128xf32, #tpu.memory_space<vmem>>, vector<1x1x2x128xf32>
    %18 = vector.shape_cast %17 : vector<1x1x2x128xf32> to vector<2x128xf32>
    %19 = vector.broadcast %16 : f32 to vector<2x128xf32>
    %20 = arith.mulf %19, %18 : vector<2x128xf32>
    %c0_23 = arith.constant 0 : index
    %c2_24 = arith.constant 2 : index
    %c0_25 = arith.constant 0 : index
    %c0_26 = arith.constant 0 : index
    %21 = vector.load %arg4[%c0_23, %c2_24, %c0_25, %c0_26] : memref<2x3x2x128xf32, #tpu.memory_space<vmem>>, vector<1x1x2x128xf32>
    %22 = vector.shape_cast %21 : vector<1x1x2x128xf32> to vector<2x128xf32>
    %23 = vector.shape_cast %20 : vector<2x128xf32> to vector<1x1x2x128xf32>
    tpu.vector_store %arg4[%c0_23, %c2_24, %c0_25, %c0_26], %23 {strides = array<i32>} : memref<2x3x2x128xf32, #tpu.memory_space<vmem>>, vector<1x1x2x128xf32>,
    %c0_27 = arith.constant 0 : index
    %c0_28 = arith.constant 0 : index
    %24 = memref.load %arg2[%c0_27, %c0_28] : memref<3x1xf32, #tpu.memory_space<smem>>
    %c1_29 = arith.constant 1 : index
    %c0_30 = arith.constant 0 : index
    %c0_31 = arith.constant 0 : index
    %c0_32 = arith.constant 0 : index
    %25 = vector.load %arg3[%c1_29, %c0_30, %c0_31, %c0_32] : memref<2x1x2x128xf32, #tpu.memory_space<vmem>>, vector<1x1x2x128xf32>
    %26 = vector.shape_cast %25 : vector<1x1x2x128xf32> to vector<2x128xf32>
    %27 = vector.broadcast %24 : f32 to vector<2x128xf32>
    %28 = arith.mulf %27, %26 : vector<2x128xf32>
    %c1_33 = arith.constant 1 : index
    %c0_34 = arith.constant 0 : index
    %c0_35 = arith.constant 0 : index
    %c0_36 = arith.constant 0 : index
    %29 = vector.load %arg4[%c1_33, %c0_34, %c0_35, %c0_36] : memref<2x3x2x128xf32, #tpu.memory_space<vmem>>, vector<1x1x2x128xf32>
    %30 = vector.shape_cast %29 : vector<1x1x2x128xf32> to vector<2x128xf32>
    %31 = vector.shape_cast %28 : vector<2x128xf32> to vector<1x1x2x128xf32>
    tpu.vector_store %arg4[%c1_33, %c0_34, %c0_35, %c0_36], %31 {strides = array<i32>} : memref<2x3x2x128xf32, #tpu.memory_space<vmem>>, vector<1x1x2x128xf32>,
    %c1_37 = arith.constant 1 : index
    %c0_38 = arith.constant 0 : index
    %32 = memref.load %arg2[%c1_37, %c0_38] : memref<3x1xf32, #tpu.memory_space<smem>>
    %c1_39 = arith.constant 1 : index
    %c0_40 = arith.constant 0 : index
    %c0_41 = arith.constant 0 : index
    %c0_42 = arith.constant 0 : index
    %33 = vector.load %arg3[%c1_39, %c0_40, %c0_41, %c0_42] : memref<2x1x2x128xf32, #tpu.memory_space<vmem>>, vector<1x1x2x128xf32>
    %34 = vector.shape_cast %33 : vector<1x1x2x128xf32> to vector<2x128xf32>
    %35 = vector.broadcast %32 : f32 to vector<2x128xf32>
    %36 = arith.mulf %35, %34 : vector<2x128xf32>
    %c1_43 = arith.constant 1 : index
    %c1_44 = arith.constant 1 : index
    %c0_45 = arith.constant 0 : index
    %c0_46 = arith.constant 0 : index
    %37 = vector.load %arg4[%c1_43, %c1_44, %c0_45, %c0_46] : memref<2x3x2x128xf32, #tpu.memory_space<vmem>>, vector<1x1x2x128xf32>
    %38 = vector.shape_cast %37 : vector<1x1x2x128xf32> to vector<2x128xf32>
    %39 = vector.shape_cast %36 : vector<2x128xf32> to vector<1x1x2x128xf32>
    tpu.vector_store %arg4[%c1_43, %c1_44, %c0_45, %c0_46], %39 {strides = array<i32>} : memref<2x3x2x128xf32, #tpu.memory_space<vmem>>, vector<1x1x2x128xf32>,
    %c2_47 = arith.constant 2 : index
    %c0_48 = arith.constant 0 : index
    %40 = memref.load %arg2[%c2_47, %c0_48] : memref<3x1xf32, #tpu.memory_space<smem>>
    %c1_49 = arith.constant 1 : index
    %c0_50 = arith.constant 0 : index
    %c0_51 = arith.constant 0 : index
    %c0_52 = arith.constant 0 : index
    %41 = vector.load %arg3[%c1_49, %c0_50, %c0_51, %c0_52] : memref<2x1x2x128xf32, #tpu.memory_space<vmem>>, vector<1x1x2x128xf32>
    %42 = vector.shape_cast %41 : vector<1x1x2x128xf32> to vector<2x128xf32>
    %43 = vector.broadcast %40 : f32 to vector<2x128xf32>
    %44 = arith.mulf %43, %42 : vector<2x128xf32>
    %c1_53 = arith.constant 1 : index
    %c2_54 = arith.constant 2 : index
    %c0_55 = arith.constant 0 : index
    %c0_56 = arith.constant 0 : index
    %45 = vector.load %arg4[%c1_53, %c2_54, %c0_55, %c0_56] : memref<2x3x2x128xf32, #tpu.memory_space<vmem>>, vector<1x1x2x128xf32>
    %46 = vector.shape_cast %45 : vector<1x1x2x128xf32> to vector<2x128xf32>
    %47 = vector.shape_cast %44 : vector<2x128xf32> to vector<1x1x2x128xf32>
    tpu.vector_store %arg4[%c1_53, %c2_54, %c0_55, %c0_56], %47 {strides = array<i32>} : memref<2x3x2x128xf32, #tpu.memory_space<vmem>>, vector<1x1x2x128xf32>,
    return
  }
  func.func @transform_0(%arg0: i32, %arg1: i32) -> (i32, i32) {
    %c0_i32 = arith.constant 0 : i32
    %c0_i32_0 = arith.constant 0 : i32
    %c0_i32_1 = arith.constant 0 : i32
    return %c0_i32, %c0_i32_0 : i32, i32
  }
  func.func @transform_1(%arg0: i32, %arg1: i32) -> (i32, i32, i32, i32) {
    %c0_i32 = arith.constant 0 : i32
    %c0_i32_0 = arith.constant 0 : i32
    %c0_i32_1 = arith.constant 0 : i32
    return %arg0, %c0_i32, %arg1, %c0_i32_0 : i32, i32, i32, i32
  }
  func.func @transform_2(%arg0: i32, %arg1: i32) -> (i32, i32, i32, i32) {
    %c0_i32 = arith.constant 0 : i32
    %c0_i32_0 = arith.constant 0 : i32
    %c0_i32_1 = arith.constant 0 : i32
    return %arg0, %c0_i32, %arg1, %c0_i32_0 : i32, i32, i32, i32
  }
}

</mosaic_0001>

<llo_original>
// kernel: tpu_custom_call.1
$region0: #{tpu_custom_call.1}
  #allocation0 [shape = 'u32[]', space=smem, size = 0x4, offset = 0x4, fixed_abs, tag = 'smem constant byte address 0x4 - core index']
  #allocation1 [shape = 'u32[144,128]{1,0:T(1,128)}', space=vmem, size = 0x12000, scoped, tag = 'internal scratch']
  %s0 = inlined_call_operand.vmem [shape: f32[3,1], index: 0, kind: input, shape index: {}]
  %s1 = inlined_call_operand.vmem [shape: f32[2,1,2,128], index: 1, kind: input, shape index: {}]
  %s2 = inlined_call_operand.hbm [shape: f32[2,3,2,128], index: 2, kind: output, shape index: {}]
  %s3 = sld [smem:[#allocation0]]
  $region22: #{tpu_custom_call.1} parent=0
    _
  %s5 = ssub.s32 1, %s3
  %s6 = scalar_select 0, %s5, %s3
  $region1: #{tpu_custom_call.1} parent=0
    #allocation2 [shape = 'u8[2048]{0}', space=smem, size = 0x800, scoped, tag = 'input window, operand 0, single buffered']
    #allocation3 [shape = 's32[1]{0}', space=sflag, size = 0x4, scoped, tag = 'scoped memory for tpu_custom_call.1']
    #allocation4 [shape = 's32[1]{0}', space=sflag, size = 0x4, scoped, tag = 'scoped memory for tpu_custom_call.1']
    #allocation5 [shape = 'u8[6144]{0}', space=vmem, size = 0x1800, scoped, tag = 'output window, operand 0, single buffered']
    %7 = vsyncpa [#allocation4], 0
    %8 = vsyncpa [#allocation3], 0
    // Predicated region
    $region2: #{tpu_custom_call.1} parent=1 // pred_check
      _
    $region3: #{tpu_custom_call.1} parent=1 // pred_check_branch
      %10 = sbr.rel (0) target = $region5
    $region4: #{tpu_custom_call.1} parent=1 // pred_region
      %s12 = ssub.s32 64, 64
      %13 = vsyncadd [#allocation4], %s12
      %s15 = sshll.u32 %s0, 4
      %s16 = int_to_ptr.vmem [resolvable:$true] %s15
      %18 = dma.vmem_to_smem %s16, 64, [#allocation2], [#allocation4]
    $region5: #{tpu_custom_call.1} parent=1 // pred_fallthru
      _
    // Predicated region
    $region6: #{tpu_custom_call.1} parent=1 // pred_check
      _
    $region7: #{tpu_custom_call.1} parent=1 // pred_check_branch
      %20 = sbr.rel (0) target = $region9
    $region8: #{tpu_custom_call.1} parent=1 // pred_region
      _
    $region9: #{tpu_custom_call.1} parent=1 // pred_fallthru
      _
    // Predicated region
    $region10: #{tpu_custom_call.1} parent=1 // pred_check
      _
    $region11: #{tpu_custom_call.1} parent=1 // pred_check_branch
      %22 = sbr.rel (0) target = $region13
    $region12: #{tpu_custom_call.1} parent=1 // pred_region
      %23 = dma.done [#allocation4], 64
    $region13: #{tpu_custom_call.1} parent=1 // pred_fallthru
      _
    %24 = sfence
    %s25 = sld [smem:[#allocation2]]
    %v26 = vld [vmem:[%s1] sm:$0x3]
    %v27 = vstv %s25
    %v28 = vmul.f32 %v27, %v26
    %29 = vst [vmem:[#allocation5] sm:$0x3] %v28
    %s30 = sld [smem:[#allocation2 + $0x80]]
    %v31 = vld [vmem:[%s1] sm:$0x3]
    %v32 = vstv %s30
    %v33 = vmul.f32 %v32, %v31
    %s34 = scalar_lea.vmem [#allocation5], 2
    %35 = vst [vmem:[%s34] sm:$0x3] %v33
    %s36 = sld [smem:[#allocation2 + $0x100]]
    %v37 = vld [vmem:[%s1] sm:$0x3]
    %v38 = vstv %s36
    %v39 = vmul.f32 %v38, %v37
    %s40 = scalar_lea.vmem [#allocation5], 4
    %41 = vst [vmem:[%s40] sm:$0x3] %v39
    %s42 = sld [smem:[#allocation2]]
    %s43 = scalar_lea.vmem %s1, 2
    %v44 = vld [vmem:[%s43] sm:$0x3]
    %v45 = vstv %s42
    %v46 = vmul.f32 %v45, %v44
    %s47 = scalar_lea.vmem [#allocation5], 6
    %48 = vst [vmem:[%s47] sm:$0x3] %v46
    %s49 = sld [smem:[#allocation2 + $0x80]]
    %v50 = vld [vmem:[%s43] sm:$0x3]
    %v51 = vstv %s49
    %v52 = vmul.f32 %v51, %v50
    %s53 = scalar_lea.vmem [#allocation5], 8
    %54 = vst [vmem:[%s53] sm:$0x3] %v52
    %s55 = sld [smem:[#allocation2 + $0x100]]
    %v56 = vld [vmem:[%s43] sm:$0x3]
    %v57 = vstv %s55
    %v58 = vmul.f32 %v57, %v56
    %s59 = scalar_lea.vmem [#allocation5], 10
    %60 = vst [vmem:[%s59] sm:$0x3] %v58
    // Predicated region
    $region14: #{tpu_custom_call.1} parent=1 // pred_check
      _
    $region15: #{tpu_custom_call.1} parent=1 // pred_check_branch
      %62 = sbr.rel (0) target = $region17
    $region16: #{tpu_custom_call.1} parent=1 // pred_region
      %s64 = ssub.s32 192, 192
      %65 = vsyncadd [#allocation3], %s64
      %s66 = sshll.u32 [#allocation5], 4
      %s67 = int_to_ptr.vmem [resolvable:$true] %s66
      %72 = dma.vmem_to_hbm [thread:$0]  %s67, 192, %s2, [#allocation3], 32, 32, 2
    $region17: #{tpu_custom_call.1} parent=1 // pred_fallthru
      _
    // Predicated region
    $region18: #{tpu_custom_call.1} parent=1 // pred_check
      _
    $region19: #{tpu_custom_call.1} parent=1 // pred_check_branch
      %74 = sbr.rel (0) target = $region21
    $region20: #{tpu_custom_call.1} parent=1 // pred_region
      %75 = dma.done [#allocation3], 192
    $region21: #{tpu_custom_call.1} parent=1 // pred_fallthru
      _
    %76 = vsyncpa [#allocation3], 1
    %77 = vsyncpa [#allocation4], 1

</llo_original>
